<compile_context>
chip_gen: v5e
topology: v5e:2x2
jax: 0.10.0
libtpu: 0.0.40
codegen_flags: <defaults>
</compile_context>

<pallas_src>
import functools

import jax
import jax.numpy as jnp
from jax.experimental import pallas as pl
from jax.experimental.pallas import tpu as pltpu


def _dice_kernel(*refs, N, C, tile_n, tile_c, has_weights):
    if has_weights:
        x_ref, t_ref, w_ref, loss_ref, inter_acc, denom_acc = refs
    else:
        x_ref, t_ref, loss_ref, inter_acc, denom_acc = refs
        w_ref = None

    ci = pl.program_id(0)          # class-tile index ("parallel")
    ni = pl.program_id(1)          # batch-tile index (reduction, "arbitrary")

    @pl.when(ni == 0)
    def _init():
        inter_acc[...] = jnp.zeros_like(inter_acc)
        denom_acc[...] = jnp.zeros_like(denom_acc)

    x = x_ref[...].astype(jnp.float32)
    t = t_ref[...].astype(jnp.float32)
    pred = jax.nn.sigmoid(x)       # EUP

    need_row_mask = (N % tile_n) != 0
    need_col_mask = (C % tile_c) != 0
    if need_row_mask or need_col_mask:
        mask = None
        if need_row_mask:
            rows = jax.lax.broadcasted_iota(jnp.int32, (tile_n, tile_c), 0)
            mask = (ni * tile_n + rows) < N
        if need_col_mask:
            cols = jax.lax.broadcasted_iota(jnp.int32, (tile_n, tile_c), 1)
            col_ok = (ci * tile_c + cols) < C
            mask = col_ok if mask is None else (mask & col_ok)
        zero = jnp.float32(0.0)
        pred = jnp.where(mask, pred, zero)
        t = jnp.where(mask, t, zero)

    # Fused reductions: intersection and (pred_sum + tgt_sum) -> 2 XLU reduces.
    inter_acc[...] += jnp.sum(pred * t, axis=0, keepdims=True)
    denom_acc[...] += jnp.sum(pred + t, axis=0, keepdims=True)

    @pl.when(ni == pl.num_programs(1) - 1)
    def _finalize():
        smooth = jnp.float32(1.0)
        num = 2.0 * inter_acc[...] + smooth
        loss_c = 1.0 - num * pl.reciprocal(denom_acc[...] + smooth, approx=False)
        if has_weights:
            loss_c = loss_c * w_ref[...].astype(jnp.float32)
        if need_col_mask:
            cols = jax.lax.broadcasted_iota(jnp.int32, (1, tile_c), 1)
            loss_c = jnp.where((ci * tile_c + cols) < C, loss_c, 0.0)
        loss_ref[...] = loss_c


def _pick_tiles(N, C):
    # Block dims must be (multiple of 8, multiple of 128) or equal full dims.
    tile_n = N if N <= 1024 else 1024     # 1024 % 16 == 0 -> bf16-safe
    tile_c = C if C <= 512 else 512
    return tile_n, tile_c


def multi_label_dice_loss(output, target, weights=None):
    """Pallas equivalent of MultiLabelDiceLoss.forward for 2-D (N, C) inputs."""
    N, C = output.shape
    assert target.shape == (N, C)
    tile_n, tile_c = _pick_tiles(N, C)
    grid = (pl.cdiv(C, tile_c), pl.cdiv(N, tile_n))   # (parallel C, reduction N)

    has_weights = weights is not None
    kernel = functools.partial(
        _dice_kernel, N=N, C=C, tile_n=tile_n, tile_c=tile_c,
        has_weights=has_weights)

    in_specs = [
        pl.BlockSpec((tile_n, tile_c), lambda ci, ni: (ni, ci)),
        pl.BlockSpec((tile_n, tile_c), lambda ci, ni: (ni, ci)),
    ]
    args = [output, target]
    if has_weights:
        w = jnp.asarray(weights, jnp.float32).reshape(1, C)
        # Indexed only by the C axis: not re-DMA'd on every N step.
        in_specs.append(pl.BlockSpec((1, tile_c), lambda ci, ni: (0, ci)))
        args.append(w)

    bytes_in = N * C * (output.dtype.itemsize + target.dtype.itemsize)
    cost = pl.CostEstimate(
        flops=6 * N * C,
        transcendentals=N * C,                 # sigmoid
        bytes_accessed=bytes_in + 4 * C + (4 * C if has_weights else 0),
    )

    per_class = pl.pallas_call(
        kernel,
        out_shape=jax.ShapeDtypeStruct((1, C), jnp.float32),
        grid_spec=pltpu.PrefetchScalarGridSpec(
            num_scalar_prefetch=0,
            grid=grid,
            in_specs=in_specs,
            out_specs=pl.BlockSpec((1, tile_c), lambda ci, ni: (0, ci)),
            scratch_shapes=[
                pltpu.VMEM((1, tile_c), jnp.float32),   # intersection acc
                pltpu.VMEM((1, tile_c), jnp.float32),   # pred_sum + tgt_sum acc
            ],
        ),
        compiler_params=pltpu.CompilerParams(
            dimension_semantics=("parallel", "arbitrary")),
        cost_estimate=cost,
    )(*args)

    # Tiny (1, C) reduction: let XLA sum the per-class losses.
    return jnp.sum(per_class)


def _reference(output, target, weights=None):
    # Pure-JAX reference mirroring the PyTorch per-column loop semantics.
    output = output.astype(jnp.float32)
    target = target.astype(jnp.float32)
    pred = jax.nn.sigmoid(output)
    smooth = 1.0
    inter = jnp.sum(pred * target, axis=0)
    denom = jnp.sum(pred, axis=0) + jnp.sum(target, axis=0) + smooth
    loss_c = 1.0 - (2.0 * inter + smooth) / denom
    if weights is not None:
        loss_c = loss_c * jnp.asarray(weights, jnp.float32)
    return jnp.sum(loss_c)


if __name__ == "__main__":
    key = jax.random.PRNGKey(0)
    k1, k2, k3, k4, k5 = jax.random.split(key, 5)

    # Small shape consistent with the module: N=8 samples, C=16 labels.
    N, C = 8, 16
    logits = jax.random.normal(k1, (N, C), dtype=jnp.float32)
    # Binary targets as float (PyTorch forward casts to float anyway).
    target = (jax.random.uniform(k2, (N, C)) > 0.5).astype(jnp.float32)

    loss = multi_label_dice_loss(logits, target)       # weights=None default
    jax.block_until_ready(loss)
    ref = _reference(logits, target)
    assert jnp.allclose(loss, ref, rtol=1e-5, atol=1e-5), (loss, ref)

    # Larger non-aligned shape: exercises N/C tiling, remainder masking,
    # per-class weights, and bf16 logit input (f32 accumulation in-kernel).
    N2, C2 = 1300, 700
    logits2 = jax.random.normal(k3, (N2, C2), dtype=jnp.float32).astype(jnp.bfloat16)
    target2 = (jax.random.uniform(k4, (N2, C2)) > 0.5).astype(jnp.float32)
    w2 = jax.random.uniform(k5, (C2,), dtype=jnp.float32)

    loss2 = multi_label_dice_loss(logits2, target2, weights=w2)
    jax.block_until_ready(loss2)
    ref2 = _reference(logits2, target2, weights=w2)
    assert jnp.allclose(loss2, ref2, rtol=1e-4, atol=1e-4), (loss2, ref2)

    print("KERNEL_OK")
</pallas_src>

<mosaic_0001>
module attributes {stable_mosaic.version = 11 : i64} {
  func.func @_dice_kernel(%arg0: i32, %arg1: i32, %arg2: memref<8x16xf32, #tpu.memory_space<vmem>>, %arg3: memref<8x16xf32, #tpu.memory_space<vmem>>, %arg4: memref<1x16xf32, #tpu.memory_space<vmem>>, %arg5: memref<1x16xf32, #tpu.memory_space<vmem>>, %arg6: memref<1x16xf32, #tpu.memory_space<vmem>>) attributes {dimension_semantics = [#tpu.dimension_semantics<parallel>, #tpu.dimension_semantics<arbitrary>], iteration_bounds = array<i64: 1, 1>, scalar_prefetch = 0 : i64, scratch_operands = 2 : i64, tpu.core_type = #tpu.core_type<tc>, window_params = [{transform_indices = @transform_0, window_bounds = array<i64: 8, 16>}, {transform_indices = @transform_1, window_bounds = array<i64: 8, 16>}, {transform_indices = @transform_2, window_bounds = array<i64: 1, 16>}]} {
    %c0_i32 = arith.constant 0 : i32
    %0 = arith.cmpi eq, %arg1, %c0_i32 : i32
    %1 = arith.extui %0 : i1 to i32
    %c0_i32_0 = arith.constant 0 : i32
    %2 = arith.cmpi ne, %1, %c0_i32_0 : i32
    scf.if %2 {
      %cst_16 = arith.constant 0.000000e+00 : f32
      %25 = vector.broadcast %cst_16 : f32 to vector<1x16xf32>
      %c0_17 = arith.constant 0 : index
      %c0_18 = arith.constant 0 : index
      %26 = vector.load %arg5[%c0_17, %c0_18] : memref<1x16xf32, #tpu.memory_space<vmem>>, vector<1x16xf32>
      tpu.vector_store %arg5[%c0_17, %c0_18], %25 {strides = array<i32>} : memref<1x16xf32, #tpu.memory_space<vmem>>, vector<1x16xf32>,
      %cst_19 = arith.constant 0.000000e+00 : f32
      %27 = vector.broadcast %cst_19 : f32 to vector<1x16xf32>
      %c0_20 = arith.constant 0 : index
      %c0_21 = arith.constant 0 : index
      %28 = vector.load %arg6[%c0_20, %c0_21] : memref<1x16xf32, #tpu.memory_space<vmem>>, vector<1x16xf32>
      tpu.vector_store %arg6[%c0_20, %c0_21], %27 {strides = array<i32>} : memref<1x16xf32, #tpu.memory_space<vmem>>, vector<1x16xf32>,
    } else {
    }
    %c0 = arith.constant 0 : index
    %c0_1 = arith.constant 0 : index
    %3 = vector.load %arg2[%c0, %c0_1] : memref<8x16xf32, #tpu.memory_space<vmem>>, vector<8x16xf32>
    %c0_2 = arith.constant 0 : index
    %c0_3 = arith.constant 0 : index
    %4 = vector.load %arg3[%c0_2, %c0_3] : memref<8x16xf32, #tpu.memory_space<vmem>>, vector<8x16xf32>
    %5 = arith.negf %3 : vector<8x16xf32>
    %6 = math.exp %5 : vector<8x16xf32>
    %cst = arith.constant 1.000000e+00 : f32
    %7 = vector.broadcast %cst : f32 to vector<8x16xf32>
    %8 = arith.addf %7, %6 : vector<8x16xf32>
    %9 = arith.divf %7, %8 : vector<8x16xf32>
    %c0_4 = arith.constant 0 : index
    %c0_5 = arith.constant 0 : index
    %10 = vector.load %arg5[%c0_4, %c0_5] : memref<1x16xf32, #tpu.memory_space<vmem>>, vector<1x16xf32>
    %11 = arith.mulf %9, %4 : vector<8x16xf32>
    %cst_6 = arith.constant dense<0.000000e+00> : vector<16xf32>
    %12 = vector.multi_reduction <add>, %11, %cst_6 [0] : vector<8x16xf32> to vector<16xf32>
    %13 = vector.shape_cast %12 : vector<16xf32> to vector<1x16xf32>
    %14 = arith.addf %10, %13 : vector<1x16xf32>
    %c0_7 = arith.constant 0 : index
    %c0_8 = arith.constant 0 : index
    %15 = vector.load %arg5[%c0_7, %c0_8] : memref<1x16xf32, #tpu.memory_space<vmem>>, vector<1x16xf32>
    tpu.vector_store %arg5[%c0_7, %c0_8], %14 {strides = array<i32>} : memref<1x16xf32, #tpu.memory_space<vmem>>, vector<1x16xf32>,
    %c0_9 = arith.constant 0 : index
    %c0_10 = arith.constant 0 : index
    %16 = vector.load %arg6[%c0_9, %c0_10] : memref<1x16xf32, #tpu.memory_space<vmem>>, vector<1x16xf32>
    %17 = arith.addf %9, %4 : vector<8x16xf32>
    %cst_11 = arith.constant dense<0.000000e+00> : vector<16xf32>
    %18 = vector.multi_reduction <add>, %17, %cst_11 [0] : vector<8x16xf32> to vector<16xf32>
    %19 = vector.shape_cast %18 : vector<16xf32> to vector<1x16xf32>
    %20 = arith.addf %16, %19 : vector<1x16xf32>
    %c0_12 = arith.constant 0 : index
    %c0_13 = arith.constant 0 : index
    %21 = vector.load %arg6[%c0_12, %c0_13] : memref<1x16xf32, #tpu.memory_space<vmem>>, vector<1x16xf32>
    tpu.vector_store %arg6[%c0_12, %c0_13], %20 {strides = array<i32>} : memref<1x16xf32, #tpu.memory_space<vmem>>, vector<1x16xf32>,
    %c0_i32_14 = arith.constant 0 : i32
    %22 = arith.cmpi eq, %arg1, %c0_i32_14 : i32
    %23 = arith.extui %22 : i1 to i32
    %c0_i32_15 = arith.constant 0 : i32
    %24 = arith.cmpi ne, %23, %c0_i32_15 : i32
    scf.if %24 {
      %c0_16 = arith.constant 0 : index
      %c0_17 = arith.constant 0 : index
      %25 = vector.load %arg5[%c0_16, %c0_17] : memref<1x16xf32, #tpu.memory_space<vmem>>, vector<1x16xf32>
      %cst_18 = arith.constant 2.000000e+00 : f32
      %26 = vector.broadcast %cst_18 : f32 to vector<1x16xf32>
      %27 = arith.mulf %26, %25 : vector<1x16xf32>
      %cst_19 = arith.constant 1.000000e+00 : f32
      %28 = vector.broadcast %cst_19 : f32 to vector<1x16xf32>
      %29 = arith.addf %27, %28 : vector<1x16xf32>
      %c0_20 = arith.constant 0 : index
      %c0_21 = arith.constant 0 : index
      %30 = vector.load %arg6[%c0_20, %c0_21] : memref<1x16xf32, #tpu.memory_space<vmem>>, vector<1x16xf32>
      %cst_22 = arith.constant 1.000000e+00 : f32
      %31 = vector.broadcast %cst_22 : f32 to vector<1x16xf32>
      %32 = arith.addf %30, %31 : vector<1x16xf32>
      %33 = tpu.reciprocal %32 : vector<1x16xf32> -> vector<1x16xf32>
      %34 = arith.mulf %29, %33 : vector<1x16xf32>
      %cst_23 = arith.constant 1.000000e+00 : f32
      %35 = vector.broadcast %cst_23 : f32 to vector<1x16xf32>
      %36 = arith.subf %35, %34 : vector<1x16xf32>
      %c0_24 = arith.constant 0 : index
      %c0_25 = arith.constant 0 : index
      %37 = vector.load %arg4[%c0_24, %c0_25] : memref<1x16xf32, #tpu.memory_space<vmem>>, vector<1x16xf32>
      tpu.vector_store %arg4[%c0_24, %c0_25], %36 {strides = array<i32>} : memref<1x16xf32, #tpu.memory_space<vmem>>, vector<1x16xf32>,
    } else {
    }
    return
  }
  func.func @transform_0(%arg0: i32, %arg1: i32) -> (i32, i32) {
    %c0_i32 = arith.constant 0 : i32
    return %arg1, %arg0 : i32, i32
  }
  func.func @transform_1(%arg0: i32, %arg1: i32) -> (i32, i32) {
    %c0_i32 = arith.constant 0 : i32
    return %arg1, %arg0 : i32, i32
  }
  func.func @transform_2(%arg0: i32, %arg1: i32) -> (i32, i32) {
    %c0_i32 = arith.constant 0 : i32
    %c0_i32_0 = arith.constant 0 : i32
    return %c0_i32, %arg0 : i32, i32
  }
}

</mosaic_0001>

<llo_original>
// kernel: tpu_custom_call.1
$region0: #{tpu_custom_call.1}
  #allocation0 [shape = 'u32[]', space=smem, size = 0x4, offset = 0x4, fixed_abs, tag = 'smem constant byte address 0x4 - core index']
  #allocation1 [shape = 'u32[72,128]{1,0:T(1,128)}', space=vmem, size = 0x9000, scoped, tag = 'internal scratch']
  #allocation2 [shape = 'f32[1,16]{1,0:T(1,128)}', space=vmem, size = 0x200, scoped, tag = 'scratch operand']
  #allocation3 [shape = 'f32[1,16]{1,0:T(1,128)}', space=vmem, size = 0x200, scoped, tag = 'scratch operand']
  %s0 = inlined_call_operand.hbm [shape: f32[8,16], index: 0, kind: input, shape index: {}]
  %s1 = inlined_call_operand.hbm [shape: f32[8,16], index: 1, kind: input, shape index: {}]
  %s2 = inlined_call_operand.hbm [shape: f32[1,16], index: 2, kind: output, shape index: {}]
  %s3 = sld [smem:[#allocation0]]
  $region34: #{tpu_custom_call.1} parent=0
    _
  %s5 = ssub.s32 1, %s3
  %s6 = scalar_select 0, %s5, %s3
  $region1: #{tpu_custom_call.1} parent=0
    #allocation4 [shape = 'u8[4096]{0}', space=vmem, size = 0x1000, scoped, tag = 'input window, operand 0, single buffered']
    #allocation5 [shape = 's32[1]{0}', space=sflag, size = 0x4, scoped, tag = 'scoped memory for tpu_custom_call.1']
    #allocation6 [shape = 's32[1]{0}', space=sflag, size = 0x4, scoped, tag = 'scoped memory for tpu_custom_call.1']
    #allocation7 [shape = 'u8[4096]{0}', space=vmem, size = 0x1000, scoped, tag = 'input window, operand 1, single buffered']
    #allocation8 [shape = 's32[1]{0}', space=sflag, size = 0x4, scoped, tag = 'scoped memory for tpu_custom_call.1']
    #allocation9 [shape = 'u8[512]{0}', space=vmem, size = 0x400, scoped, tag = 'output window, operand 0, single buffered']
    %7 = vsyncpa [#allocation5], 0
    %8 = vsyncpa [#allocation8], 0
    %9 = vsyncpa [#allocation6], 0
    // Predicated region
    $region2: #{tpu_custom_call.1} parent=1 // pred_check
      _
    $region3: #{tpu_custom_call.1} parent=1 // pred_check_branch
      %11 = sbr.rel (0) target = $region5
    $region4: #{tpu_custom_call.1} parent=1 // pred_region
      %13 = vsyncadd [#allocation5], 0
      %s15 = sshll.u32 %s0, 4
      %s16 = int_to_ptr.hbm [resolvable:$true] %s15
      %s17 = sshll.u32 [#allocation4], 4
      %s18 = int_to_ptr.vmem [resolvable:$true] %s17
      %20 = dma.hbm_to_vmem [thread:$0]  %s16, 128, %s18, [#allocation5]
    $region5: #{tpu_custom_call.1} parent=1 // pred_fallthru
      _
    // Predicated region
    $region6: #{tpu_custom_call.1} parent=1 // pred_check
      _
    $region7: #{tpu_custom_call.1} parent=1 // pred_check_branch
      %22 = sbr.rel (0) target = $region9
    $region8: #{tpu_custom_call.1} parent=1 // pred_region
      %24 = vsyncadd [#allocation8], 0
      %s26 = sshll.u32 %s1, 4
      %s27 = int_to_ptr.hbm [resolvable:$true] %s26
      %s28 = sshll.u32 [#allocation7], 4
      %s29 = int_to_ptr.vmem [resolvable:$true] %s28
      %31 = dma.hbm_to_vmem [thread:$0]  %s27, 128, %s29, [#allocation8]
    $region9: #{tpu_custom_call.1} parent=1 // pred_fallthru
      _
    // Predicated region
    $region10: #{tpu_custom_call.1} parent=1 // pred_check
      _
    $region11: #{tpu_custom_call.1} parent=1 // pred_check_branch
      %33 = sbr.rel (0) target = $region13
    $region12: #{tpu_custom_call.1} parent=1 // pred_region
      %35 = dma.done [#allocation5], 128
    $region13: #{tpu_custom_call.1} parent=1 // pred_fallthru
      _
    // Predicated region
    $region14: #{tpu_custom_call.1} parent=1 // pred_check
      _
    $region15: #{tpu_custom_call.1} parent=1 // pred_check_branch
      %37 = sbr.rel (0) target = $region17
    $region16: #{tpu_custom_call.1} parent=1 // pred_region
      %39 = dma.done [#allocation8], 128
    $region17: #{tpu_custom_call.1} parent=1 // pred_fallthru
      _
    %p40 = scmp.eq.s32.totalorder 0, 0
    // Predicated region
    $region18: #{tpu_custom_call.1} parent=1 // pred_check
      %p41 = pneg %p40
    $region19: #{tpu_custom_call.1} parent=1 // pred_check_branch
      %43 = sbr.rel (%p41) target = $region21
    $region20: #{tpu_custom_call.1} parent=1 // pred_region
      %vm44 = vcmask 122880
      %45 = vst.msk [vmem:[#allocation2] sm:$0x1] %vm44, 0.0
      %46 = vst.msk [vmem:[#allocation3] sm:$0x1] %vm44, 0.0
    $region21: #{tpu_custom_call.1} parent=1 // pred_fallthru
      _
    %v47 = vld [vmem:[#allocation4] sm:$0xff]
    %v48 = vld [vmem:[#allocation7] sm:$0xff]
    %v49 = vxor.u32 %v47, 2147483648
    %v50 = vmul.f32 %v49, 1.442695
    %v51 = vpow.pop %v50
    %v52 = vadd.f32 %v51, 1.0
    %v53 = vrcp.pop %v52
    %v54 = vmul.f32 %v52, %v53
    %v55 = vsub.f32 1.0, %v54
    %v56 = vmul.f32 %v53, %v55
    %v57 = vadd.f32 %v53, %v56
    %vm58 = vweird.f32 %v52
    %vm59 = vweird.f32 %v53
    %vm60 = vmor %vm58, %vm59
    %v61 = vsel %vm60, %v53, %v57
    %v62 = vand.u32 2147483647, %v52
    %vm63 = vcmp.eq.f32.partialorder %v62, 8.507059e+37
    %v64 = vand.u32 %v52, 2147483648
    %v65 = vor.u32 1.1754944e-38, %v64
    %v66 = vsel %vm63, %v65, %v61
    %v67 = vmul.f32 1.0, %v66
    %v68 = vld [vmem:[#allocation2] sm:$0x1]
    %v69 = vmul.f32 %v67, %v48
    %vm70 = vcmask 130048
    %v71 = vsel %vm70, %v69, 0.0
    %v72 = vrot.slane %v71, 4
    %v73 = vadd.f32 %v71, %v72
    %v74 = vrot.slane %v73, 2
    %v75 = vadd.f32 %v73, %v74
    %v76 = vrot.slane %v75, 1
    %v77 = vadd.f32 %v75, %v76
    %v78 = vadd.f32 %v68, %v77
    %vm79 = vcmask 122880
    %80 = vst.msk [vmem:[#allocation2] sm:$0x1] %vm79, %v78
    %v81 = vld [vmem:[#allocation3] sm:$0x1]
    %v82 = vadd.f32 %v67, %v48
    %v83 = vsel %vm70, %v82, 0.0
    %v84 = vrot.slane %v83, 4
    %v85 = vadd.f32 %v83, %v84
    %v86 = vrot.slane %v85, 2
    %v87 = vadd.f32 %v85, %v86
    %v88 = vrot.slane %v87, 1
    %v89 = vadd.f32 %v87, %v88
    %v90 = vadd.f32 %v81, %v89
    %91 = vst.msk [vmem:[#allocation3] sm:$0x1] %vm79, %v90
    // Predicated region
    $region22: #{tpu_custom_call.1} parent=1 // pred_check
      %p92 = pneg %p40
    $region23: #{tpu_custom_call.1} parent=1 // pred_check_branch
      %94 = sbr.rel (%p92) target = $region25
    $region24: #{tpu_custom_call.1} parent=1 // pred_region
      %v95 = vld [vmem:[#allocation2] sm:$0x1]
      %v96 = vmul.f32 %v95, 2.0
      %v97 = vadd.f32 %v96, 1.0
      %v98 = vld [vmem:[#allocation3] sm:$0x1]
      %v99 = vadd.f32 %v98, 1.0
      %v100 = vrcp.pop %v99
      %v101 = vmul.f32 %v99, %v100
      %v102 = vsub.f32 1.0, %v101
      %v103 = vmul.f32 %v100, %v102
      %v104 = vadd.f32 %v100, %v103
      %vm105 = vweird.f32 %v99
      %vm106 = vweird.f32 %v100
      %vm107 = vmor %vm105, %vm106
      %v108 = vsel %vm107, %v100, %v104
      %v109 = vand.u32 2147483647, %v99
      %vm110 = vcmp.eq.f32.partialorder %v109, 8.507059e+37
      %v111 = vand.u32 %v99, 2147483648
      %v112 = vor.u32 1.1754944e-38, %v111
      %v113 = vsel %vm110, %v112, %v108
      %v114 = vmul.f32 %v97, %v113
      %v115 = vsub.f32 1.0, %v114
      %116 = vst.msk [vmem:[#allocation9] sm:$0x1] %vm79, %v115
    $region25: #{tpu_custom_call.1} parent=1 // pred_fallthru
      _
    // Predicated region
    $region26: #{tpu_custom_call.1} parent=1 // pred_check
      _
    $region27: #{tpu_custom_call.1} parent=1 // pred_check_branch
      %118 = sbr.rel (0) target = $region29
    $region28: #{tpu_custom_call.1} parent=1 // pred_region
      %120 = vsyncadd [#allocation6], 0
      %s122 = sshll.u32 [#allocation9], 4
      %s123 = int_to_ptr.vmem [resolvable:$true] %s122
      %s124 = sshll.u32 %s2, 4
      %s125 = int_to_ptr.hbm [resolvable:$true] %s124
      %127 = dma.vmem_to_hbm [thread:$0]  %s123, 16, %s125, [#allocation6]
    $region29: #{tpu_custom_call.1} parent=1 // pred_fallthru
      _
    // Predicated region
    $region30: #{tpu_custom_call.1} parent=1 // pred_check
      _
    $region31: #{tpu_custom_call.1} parent=1 // pred_check_branch
      %129 = sbr.rel (0) target = $region33
    $region32: #{tpu_custom_call.1} parent=1 // pred_region
      %131 = dma.done [#allocation6], 16
    $region33: #{tpu_custom_call.1} parent=1 // pred_fallthru
      _
    %132 = vsyncpa [#allocation5], 1
    %133 = vsyncpa [#allocation8], 1
    %134 = vsyncpa [#allocation6], 1

</llo_original>
